<compile_context>
chip_gen: v5e
topology: v5e:2x2
jax: 0.10.0
libtpu: 0.0.40
codegen_flags: <defaults>
</compile_context>

<pallas_src>
import functools

import jax
import jax.numpy as jnp
from jax.experimental import pallas as pl
from jax.experimental.pallas import tpu as pltpu

KERNELS = (2, 3, 6, 7)
KMAX = max(KERNELS)          # 7 taps after fusing all branches
LANE = 128


def _round_up(x, m):
    return (x + m - 1) // m * m


# --------------------------------------------------------------------------
# Pallas kernel: one im2col + one MXU matmul per block of TB rows.
# --------------------------------------------------------------------------
def _dilated_inception_kernel(x_ref, w_ref, b_ref, o_ref, *, dilation, w_out, tb):
    # x_ref : (1, Cin,  W   *TB)   rows-on-lanes, time folded into the lane axis
    # w_ref : (Cout, KMAX*Cin)     fused, transposed weights
    # b_ref : (Cout, 1)            fused bias
    # o_ref : (1, Cout, Wout*TB)
    x = x_ref[0]                                           # (Cin, W*TB)

    # Tap m covers lane columns [m*d*TB, (m*d + Wout)*TB): lane-aligned slices
    # (offsets are multiples of TB >= 128), so gathering them is cheap.
    taps = [
        x[:, m * dilation * tb:(m * dilation + w_out) * tb]    # (Cin, Wout*TB)
        for m in range(KMAX)
    ]
    x_col = jnp.concatenate(taps, axis=0)                  # (KMAX*Cin, Wout*TB)

    # Single MXU contraction, K = 7*Cin, N = Wout*TB; bias fused into the store.
    acc = jnp.dot(w_ref[...], x_col, preferred_element_type=jnp.float32)
    o_ref[0] = (acc + b_ref[...]).astype(o_ref.dtype)


# --------------------------------------------------------------------------
# Weight fusion: 4 branch Conv2d weights -> one (Cout, 7*Cin) matrix.
# --------------------------------------------------------------------------
def _fuse_weights(branch_weights, branch_biases, cin, dtype):
    co = branch_weights[0].shape[0]
    cout = co * len(KERNELS)
    w_fused = jnp.zeros((KMAX, cin, cout), dtype=dtype)
    for k_idx, k in enumerate(KERNELS):
        wk = branch_weights[k_idx]                         # (co, cin, 1, k)
        for j in range(k):
            # Branch k's tap j lines up with fused tap (KMAX - k + j) after the
            # "keep last Wout" truncation.
            w_fused = w_fused.at[KMAX - k + j, :,
                                 k_idx * co:(k_idx + 1) * co].set(wk[:, :, 0, j].T)
    w2dT = w_fused.reshape(KMAX * cin, cout).T             # (Cout, KMAX*Cin)
    b2d = jnp.concatenate(branch_biases).reshape(cout, 1).astype(dtype)
    return w2dT, b2d


# --------------------------------------------------------------------------
# Tile-size selection (multiple of 128 lanes, VMEM-budgeted per generation).
# --------------------------------------------------------------------------
def _pick_tb(cin, cout, w, wout, bh, budget_bytes=12 << 20, tb_max=1024):
    # f32 bytes per lane-row: double-buffered input + double-buffered output
    # + im2col slab + f32 accumulator.
    per_lane = 4 * (2 * cin * w + 2 * cout * wout
                    + KMAX * cin * wout + cout * wout)
    tb = tb_max
    while tb > LANE and tb * per_lane > budget_bytes:
        tb -= LANE
    tb = min(tb, _round_up(bh, LANE))                  # don't exceed the problem
    # Prefer >= 2 grid steps so the parallel row axis can shard across v7x's
    # two TensorCores.
    if pl.cdiv(bh, tb) < 2 and bh > LANE:
        tb = max(LANE, _round_up(pl.cdiv(bh, 2), LANE))
    return tb


# --------------------------------------------------------------------------
# Lane-dense entry point (blocked layout, no transposes).
# --------------------------------------------------------------------------
def dilated_inception_blocked(x_blocked, w2dT, b2d, *, dilation, w_in, tb):
    """x_blocked: (nb, Cin, W*TB) with rows on lanes. Returns (nb, Cout, Wout*TB)."""
    nb, cin, wtb = x_blocked.shape
    assert wtb == w_in * tb
    cout = w2dT.shape[0]
    wout = w_in - dilation * (KMAX - 1)
    assert wout > 0, "time dim too short for kernel-7 branch"

    kernel = functools.partial(_dilated_inception_kernel,
                               dilation=dilation, w_out=wout, tb=tb)
    return pl.pallas_call(
        kernel,
        out_shape=jax.ShapeDtypeStruct((nb, cout, wout * tb), x_blocked.dtype),
        grid=(nb,),
        in_specs=[
            pl.BlockSpec((1, cin, w_in * tb), lambda i: (i, 0, 0)),
            pl.BlockSpec((cout, KMAX * cin), lambda i: (0, 0)),
            pl.BlockSpec((cout, 1), lambda i: (0, 0)),
        ],
        out_specs=pl.BlockSpec((1, cout, wout * tb), lambda i: (i, 0, 0)),
        compiler_params=pltpu.CompilerParams(
            dimension_semantics=("parallel",),
            vmem_limit_bytes=32 * 1024 * 1024,
        ),
    )(x_blocked, w2dT, b2d)


# --------------------------------------------------------------------------
# PyTorch-interface wrapper (NCHW in / NCHW out).
# --------------------------------------------------------------------------
def dilated_inception_forward(x_nchw, branch_weights, branch_biases, dilation=1):
    """x_nchw: (B, Cin, H, W). branch_weights[i]: (co, Cin, 1, k_i). Returns NCHW."""
    B, Cin, H, W = x_nchw.shape
    co = branch_weights[0].shape[0]
    Cout = co * len(KERNELS)
    Wout = W - dilation * (KMAX - 1)
    assert Wout > 0, "time dim too short for kernel-7 branch"

    w2dT, b2d = _fuse_weights(branch_weights, branch_biases, Cin, x_nchw.dtype)

    BH = B * H
    TB = _pick_tb(Cin, Cout, W, Wout, BH)
    BH_pad = _round_up(BH, TB)
    nb = BH_pad // TB

    # (B,Cin,H,W) -> (Cin, BH, W) -> pad rows -> (nb, Cin, W, TB) -> (nb, Cin, W*TB)
    xr = jnp.transpose(x_nchw, (1, 0, 2, 3)).reshape(Cin, BH, W)
    if BH_pad != BH:
        xr = jnp.pad(xr, ((0, 0), (0, BH_pad - BH), (0, 0)))
    x_blocked = (xr.reshape(Cin, nb, TB, W)
                   .transpose(1, 0, 3, 2)
                   .reshape(nb, Cin, W * TB))

    out_blocked = dilated_inception_blocked(
        x_blocked, w2dT, b2d, dilation=dilation, w_in=W, tb=TB)

    # (nb, Cout, Wout*TB) -> (BH, Cout, Wout) -> (B, Cout, H, Wout)
    out = (out_blocked.reshape(nb, Cout, Wout, TB)
                      .transpose(0, 3, 1, 2)
                      .reshape(BH_pad, Cout, Wout)[:BH]
                      .reshape(B, H, Cout, Wout)
                      .transpose(0, 2, 1, 3))
    return out


# --------------------------------------------------------------------------
# Pure-JAX reference mirroring the PyTorch forward.
# --------------------------------------------------------------------------
def dilated_inception_reference(x_nchw, branch_weights, branch_biases, dilation):
    outs = []
    for k_idx, _ in enumerate(KERNELS):
        o = jax.lax.conv_general_dilated(
            x_nchw, branch_weights[k_idx],
            window_strides=(1, 1), padding="VALID",
            rhs_dilation=(1, dilation),
            dimension_numbers=("NCHW", "OIHW", "NCHW"))
        o = o + branch_biases[k_idx][None, :, None, None]
        outs.append(o)
    wout = outs[-1].shape[3]
    outs = [o[..., -wout:] for o in outs]
    return jnp.concatenate(outs, axis=1)


if __name__ == "__main__":
    # Module config: in_dim=4, out_dim=8 (-> 2 channels per branch), dilation=1.
    in_dim, out_dim, dilation_factor = 4, 8, 1
    co = out_dim // len(KERNELS)

    B, H, W = 2, 16, 16
    key = jax.random.PRNGKey(0)
    kx, *kws = jax.random.split(key, 1 + 2 * len(KERNELS))

    x = jax.random.normal(kx, (B, in_dim, H, W), dtype=jnp.float32)

    branch_weights, branch_biases = [], []
    for i, k in enumerate(KERNELS):
        branch_weights.append(
            0.1 * jax.random.normal(kws[2 * i], (co, in_dim, 1, k), jnp.float32))
        branch_biases.append(
            0.1 * jax.random.normal(kws[2 * i + 1], (co,), jnp.float32))

    y = dilated_inception_forward(x, branch_weights, branch_biases, dilation_factor)
    y = jax.block_until_ready(y)

    y_ref = dilated_inception_reference(x, branch_weights, branch_biases,
                                        dilation_factor)
    assert y.shape == (B, out_dim, H, W - dilation_factor * (KMAX - 1)), y.shape
    assert jnp.allclose(y, y_ref, atol=1e-4, rtol=1e-4), \
        float(jnp.max(jnp.abs(y - y_ref)))

    print("KERNEL_OK")
</pallas_src>

<mosaic_0001>
module attributes {stable_mosaic.version = 11 : i64} {
  func.func @_dilated_inception_kernel(%arg0: i32, %arg1: memref<1x4x2048xf32, #tpu.memory_space<vmem>>, %arg2: memref<8x28xf32, #tpu.memory_space<vmem>>, %arg3: memref<8x1xf32, #tpu.memory_space<vmem>>, %arg4: memref<1x8x1280xf32, #tpu.memory_space<vmem>>) attributes {dimension_semantics = [#tpu.dimension_semantics<parallel>], iteration_bounds = array<i64: 1>, scalar_prefetch = 0 : i64, scratch_operands = 0 : i64, tpu.core_type = #tpu.core_type<tc>, window_params = [{transform_indices = @transform_0, window_bounds = array<i64: 1, 4, 2048>}, {pipeline_mode = #tpu.pipeline_mode<synchronous>, transform_indices = @transform_1, window_bounds = array<i64: 8, 28>}, {pipeline_mode = #tpu.pipeline_mode<synchronous>, transform_indices = @transform_2, window_bounds = array<i64: 8, 1>}, {transform_indices = @transform_3, window_bounds = array<i64: 1, 8, 1280>}]} {
    %c0 = arith.constant 0 : index
    %c0_0 = arith.constant 0 : index
    %c0_1 = arith.constant 0 : index
    %0 = vector.load %arg1[%c0, %c0_0, %c0_1] : memref<1x4x2048xf32, #tpu.memory_space<vmem>>, vector<1x4x2048xf32>
    %1 = vector.shape_cast %0 : vector<1x4x2048xf32> to vector<4x2048xf32>
    %2 = vector.extract_strided_slice %1 {offsets = [0, 0], sizes = [4, 1280], strides = [1, 1]} : vector<4x2048xf32> to vector<4x1280xf32>
    %3 = vector.extract_strided_slice %1 {offsets = [0, 128], sizes = [4, 1280], strides = [1, 1]} : vector<4x2048xf32> to vector<4x1280xf32>
    %4 = vector.extract_strided_slice %1 {offsets = [0, 256], sizes = [4, 1280], strides = [1, 1]} : vector<4x2048xf32> to vector<4x1280xf32>
    %5 = vector.extract_strided_slice %1 {offsets = [0, 384], sizes = [4, 1280], strides = [1, 1]} : vector<4x2048xf32> to vector<4x1280xf32>
    %6 = vector.extract_strided_slice %1 {offsets = [0, 512], sizes = [4, 1280], strides = [1, 1]} : vector<4x2048xf32> to vector<4x1280xf32>
    %7 = vector.extract_strided_slice %1 {offsets = [0, 640], sizes = [4, 1280], strides = [1, 1]} : vector<4x2048xf32> to vector<4x1280xf32>
    %8 = vector.extract_strided_slice %1 {offsets = [0, 768], sizes = [4, 1280], strides = [1, 1]} : vector<4x2048xf32> to vector<4x1280xf32>
    %9 = tpu.concatenate %2, %3, %4, %5, %6, %7, %8 in 0 : vector<4x1280xf32>, vector<4x1280xf32>, vector<4x1280xf32>, vector<4x1280xf32>, vector<4x1280xf32>, vector<4x1280xf32>, vector<4x1280xf32> -> vector<28x1280xf32>
    %c0_2 = arith.constant 0 : index
    %c0_3 = arith.constant 0 : index
    %10 = vector.load %arg2[%c0_2, %c0_3] : memref<8x28xf32, #tpu.memory_space<vmem>>, vector<8x28xf32>
    %cst = arith.constant dense<0.000000e+00> : vector<8x1280xf32>
    %11 = tpu.matmul %10, %9, %cst {dimension_numbers = #tpu.dot_dimension_numbers<[1], [0], [0], [1], [0, 0, 1, 1], [], []>} : vector<8x28xf32>, vector<28x1280xf32>, vector<8x1280xf32> -> vector<8x1280xf32>
    %c0_4 = arith.constant 0 : index
    %c0_5 = arith.constant 0 : index
    %12 = vector.load %arg3[%c0_4, %c0_5] : memref<8x1xf32, #tpu.memory_space<vmem>>, vector<8x1xf32>
    %13 = vector.broadcast %12 : vector<8x1xf32> to vector<8x1280xf32>
    %14 = arith.addf %11, %13 : vector<8x1280xf32>
    %c0_6 = arith.constant 0 : index
    %c0_7 = arith.constant 0 : index
    %c0_8 = arith.constant 0 : index
    %15 = vector.load %arg4[%c0_6, %c0_7, %c0_8] : memref<1x8x1280xf32, #tpu.memory_space<vmem>>, vector<1x8x1280xf32>
    %16 = vector.shape_cast %15 : vector<1x8x1280xf32> to vector<8x1280xf32>
    %17 = vector.shape_cast %14 : vector<8x1280xf32> to vector<1x8x1280xf32>
    tpu.vector_store %arg4[%c0_6, %c0_7, %c0_8], %17 {strides = array<i32>} : memref<1x8x1280xf32, #tpu.memory_space<vmem>>, vector<1x8x1280xf32>,
    return
  }
  func.func @transform_0(%arg0: i32) -> (i32, i32, i32) {
    %c0_i32 = arith.constant 0 : i32
    %c0_i32_0 = arith.constant 0 : i32
    %c0_i32_1 = arith.constant 0 : i32
    return %arg0, %c0_i32, %c0_i32_0 : i32, i32, i32
  }
  func.func @transform_1(%arg0: i32) -> (i32, i32) {
    %c0_i32 = arith.constant 0 : i32
    %c0_i32_0 = arith.constant 0 : i32
    %c0_i32_1 = arith.constant 0 : i32
    return %c0_i32, %c0_i32_0 : i32, i32
  }
  func.func @transform_2(%arg0: i32) -> (i32, i32) {
    %c0_i32 = arith.constant 0 : i32
    %c0_i32_0 = arith.constant 0 : i32
    %c0_i32_1 = arith.constant 0 : i32
    return %c0_i32, %c0_i32_0 : i32, i32
  }
  func.func @transform_3(%arg0: i32) -> (i32, i32, i32) {
    %c0_i32 = arith.constant 0 : i32
    %c0_i32_0 = arith.constant 0 : i32
    %c0_i32_1 = arith.constant 0 : i32
    return %arg0, %c0_i32, %c0_i32_0 : i32, i32, i32
  }
}

</mosaic_0001>

<llo_original>
// kernel: tpu_custom_call.1
$region0: #{tpu_custom_call.1}
  #allocation0 [shape = 'u32[]', space=smem, size = 0x4, offset = 0x4, fixed_abs, tag = 'smem constant byte address 0x4 - core index']
  #allocation1 [shape = 'u32[72,128]{1,0:T(1,128)}', space=vmem, size = 0x9000, scoped, tag = 'internal scratch']
  %s0 = inlined_call_operand.hbm [shape: f32[1,4,2048], index: 0, kind: input, shape index: {}]
  %s1 = inlined_call_operand.vmem [shape: f32[8,28], index: 1, kind: input, shape index: {}]
  %s2 = inlined_call_operand.vmem [shape: f32[8,1], index: 2, kind: input, shape index: {}]
  %s3 = inlined_call_operand.hbm [shape: f32[1,8,1280], index: 3, kind: output, shape index: {}]
  %s4 = sld [smem:[#allocation0]]
  $region26: #{tpu_custom_call.1} parent=0
    _
  %s6 = ssub.s32 1, %s4
  %s7 = scalar_select 0, %s6, %s4
  $region1: #{tpu_custom_call.1} parent=0
    #allocation2 [shape = 'u8[32768]{0}', space=vmem, size = 0x8000, scoped, tag = 'input window, operand 0, single buffered']
    #allocation3 [shape = 's32[1]{0}', space=sflag, size = 0x4, scoped, tag = 'scoped memory for tpu_custom_call.1']
    #allocation4 [shape = 's32[1]{0}', space=sflag, size = 0x4, scoped, tag = 'scoped memory for tpu_custom_call.1']
    #allocation5 [shape = 'u8[40960]{0}', space=vmem, size = 0xa000, scoped, tag = 'output window, operand 0, single buffered']
    %8 = vsyncpa [#allocation3], 0
    %9 = vsyncpa [#allocation4], 0
    // Predicated region
    $region2: #{tpu_custom_call.1} parent=1 // pred_check
      _
    $region3: #{tpu_custom_call.1} parent=1 // pred_check_branch
      %11 = sbr.rel (0) target = $region5
    $region4: #{tpu_custom_call.1} parent=1 // pred_region
      %13 = vsyncadd [#allocation3], 0
      %s15 = sshll.u32 %s0, 4
      %s16 = int_to_ptr.hbm [resolvable:$true] %s15
      %s17 = sshll.u32 [#allocation2], 4
      %s18 = int_to_ptr.vmem [resolvable:$true] %s17
      %20 = dma.hbm_to_vmem [thread:$0]  %s16, 1024, %s18, [#allocation3]
    $region5: #{tpu_custom_call.1} parent=1 // pred_fallthru
      _
    // Predicated region
    $region6: #{tpu_custom_call.1} parent=1 // pred_check
      _
    $region7: #{tpu_custom_call.1} parent=1 // pred_check_branch
      %22 = sbr.rel (0) target = $region9
    $region8: #{tpu_custom_call.1} parent=1 // pred_region
      _
    $region9: #{tpu_custom_call.1} parent=1 // pred_fallthru
      _
    // Predicated region
    $region10: #{tpu_custom_call.1} parent=1 // pred_check
      _
    $region11: #{tpu_custom_call.1} parent=1 // pred_check_branch
      %24 = sbr.rel (0) target = $region13
    $region12: #{tpu_custom_call.1} parent=1 // pred_region
      _
    $region13: #{tpu_custom_call.1} parent=1 // pred_fallthru
      _
    // Predicated region
    $region14: #{tpu_custom_call.1} parent=1 // pred_check
      _
    $region15: #{tpu_custom_call.1} parent=1 // pred_check_branch
      %26 = sbr.rel (0) target = $region17
    $region16: #{tpu_custom_call.1} parent=1 // pred_region
      %28 = dma.done [#allocation3], 1024
    $region17: #{tpu_custom_call.1} parent=1 // pred_fallthru
      _
    %v29 = vld [vmem:[#allocation2] sm:$0xff]
    %v30 = vld [vmem:[#allocation2 + $0x8] sm:$0xff]
    %v31 = vld [vmem:[#allocation2 + $0x10] sm:$0xff]
    %v32 = vld [vmem:[#allocation2 + $0x18] sm:$0xff]
    %v33 = vld [vmem:[#allocation2 + $0x20] sm:$0xff]
    %v34 = vld [vmem:[#allocation2 + $0x28] sm:$0xff]
    %v35 = vld [vmem:[#allocation2 + $0x30] sm:$0xff]
    %v36 = vld [vmem:[#allocation2 + $0x38] sm:$0xff]
    %42 = vst [vmem:[#allocation1] ss:$2 sm:$0xff] %v29
    %s43 = scalar_lea.vmem [#allocation1], 16
    %44 = vst [vmem:[%s43] ss:$2 sm:$0xff] %v30
    %s45 = scalar_lea.vmem [#allocation1], 32
    %46 = vst [vmem:[%s45] ss:$2 sm:$0xff] %v31
    %s47 = scalar_lea.vmem [#allocation1], 48
    %48 = vst [vmem:[%s47] ss:$2 sm:$0xff] %v32
    %v49 = vld.sshfl [vmem:[#allocation1] sm:$0xff pattern:$0x75316420]
    %v50 = vld.sshfl [vmem:[#allocation1 + $0x8] sm:$0xff pattern:$0x75316420]
    %v51 = vld.sshfl [vmem:[#allocation1 + $0x10] sm:$0xff pattern:$0x75316420]
    %v52 = vld.sshfl [vmem:[#allocation1 + $0x18] sm:$0xff pattern:$0x75316420]
    %v53 = vld.sshfl [vmem:[#allocation1 + $0x20] sm:$0xff pattern:$0x75316420]
    %v54 = vld.sshfl [vmem:[#allocation1 + $0x28] sm:$0xff pattern:$0x75316420]
    %v55 = vld.sshfl [vmem:[#allocation1 + $0x30] sm:$0xff pattern:$0x75316420]
    %v56 = vld.sshfl [vmem:[#allocation1 + $0x38] sm:$0xff pattern:$0x75316420]
    %57 = vst [vmem:[#allocation1] ss:$2 sm:$0xff] %v33
    %v58 = vld.sshfl [vmem:[#allocation1] sm:$0xff pattern:$0x75316420]
    %v59 = vld.sshfl [vmem:[#allocation1 + $0x8] sm:$0xff pattern:$0x75316420]
    %s71 = scalar_lea.vmem [#allocation1], 1
    %72 = vst [vmem:[%s71] ss:$2 sm:$0xff] %v29
    %s73 = scalar_lea.vmem [#allocation1], 17
    %74 = vst [vmem:[%s73] ss:$2 sm:$0xff] %v30
    %s75 = scalar_lea.vmem [#allocation1], 33
    %76 = vst [vmem:[%s75] ss:$2 sm:$0xff] %v31
    %s77 = scalar_lea.vmem [#allocation1], 49
    %78 = vst [vmem:[%s77] ss:$2 sm:$0xff] %v32
    %v79 = vld.sshfl [vmem:[#allocation1 + $0x8] sm:$0xff pattern:$0x75316420]
    %v80 = vld.sshfl [vmem:[#allocation1 + $0x10] sm:$0xff pattern:$0x75316420]
    %v81 = vld.sshfl [vmem:[#allocation1 + $0x18] sm:$0xff pattern:$0x75316420]
    %v82 = vld.sshfl [vmem:[#allocation1 + $0x20] sm:$0xff pattern:$0x75316420]
    %v83 = vld.sshfl [vmem:[#allocation1 + $0x28] sm:$0xff pattern:$0x75316420]
    %v84 = vld.sshfl [vmem:[#allocation1 + $0x30] sm:$0xff pattern:$0x75316420]
    %v85 = vld.sshfl [vmem:[#allocation1 + $0x38] sm:$0xff pattern:$0x75316420]
    %86 = vst [vmem:[%s71] ss:$2 sm:$0xff] %v33
    %87 = vst [vmem:[%s73] ss:$2 sm:$0xff] %v34
    %v88 = vld.sshfl [vmem:[#allocation1] sm:$0xff pattern:$0x75316420]
    %v89 = vld.sshfl [vmem:[#allocation1 + $0x8] sm:$0xff pattern:$0x75316420]
    %v90 = vld.sshfl [vmem:[#allocation1 + $0x10] sm:$0xff pattern:$0x75316420]
    %101 = vst [vmem:[#allocation1] ss:$2 sm:$0xff] %v30
    %s102 = scalar_lea.vmem [#allocation1], 16
    %103 = vst [vmem:[%s102] ss:$2 sm:$0xff] %v31
    %s104 = scalar_lea.vmem [#allocation1], 32
    %105 = vst [vmem:[%s104] ss:$2 sm:$0xff] %v32
    %s106 = scalar_lea.vmem [#allocation1], 48
    %107 = vst [vmem:[%s106] ss:$2 sm:$0xff] %v33
    %v108 = vld.sshfl [vmem:[#allocation1] sm:$0xff pattern:$0x75316420]
    %v109 = vld.sshfl [vmem:[#allocation1 + $0x8] sm:$0xff pattern:$0x75316420]
    %v110 = vld.sshfl [vmem:[#allocation1 + $0x10] sm:$0xff pattern:$0x75316420]
    %v111 = vld.sshfl [vmem:[#allocation1 + $0x18] sm:$0xff pattern:$0x75316420]
    %v112 = vld.sshfl [vmem:[#allocation1 + $0x20] sm:$0xff pattern:$0x75316420]
    %v113 = vld.sshfl [vmem:[#allocation1 + $0x28] sm:$0xff pattern:$0x75316420]
    %v114 = vld.sshfl [vmem:[#allocation1 + $0x30] sm:$0xff pattern:$0x75316420]
    %v115 = vld.sshfl [vmem:[#allocation1 + $0x38] sm:$0xff pattern:$0x75316420]
    %116 = vst [vmem:[#allocation1] ss:$2 sm:$0xff] %v34
    %v117 = vld.sshfl [vmem:[#allocation1] sm:$0xff pattern:$0x75316420]
    %v118 = vld.sshfl [vmem:[#allocation1 + $0x8] sm:$0xff pattern:$0x75316420]
    %s130 = scalar_lea.vmem [#allocation1], 1
    %131 = vst [vmem:[%s130] ss:$2 sm:$0xff] %v30
    %s132 = scalar_lea.vmem [#allocation1], 17
    %133 = vst [vmem:[%s132] ss:$2 sm:$0xff] %v31
    %s134 = scalar_lea.vmem [#allocation1], 33
    %135 = vst [vmem:[%s134] ss:$2 sm:$0xff] %v32
    %s136 = scalar_lea.vmem [#allocation1], 49
    %137 = vst [vmem:[%s136] ss:$2 sm:$0xff] %v33
    %v138 = vld.sshfl [vmem:[#allocation1 + $0x8] sm:$0xff pattern:$0x75316420]
    %v139 = vld.sshfl [vmem:[#allocation1 + $0x10] sm:$0xff pattern:$0x75316420]
    %v140 = vld.sshfl [vmem:[#allocation1 + $0x18] sm:$0xff pattern:$0x75316420]
    %v141 = vld.sshfl [vmem:[#allocation1 + $0x20] sm:$0xff pattern:$0x75316420]
    %v142 = vld.sshfl [vmem:[#allocation1 + $0x28] sm:$0xff pattern:$0x75316420]
    %v143 = vld.sshfl [vmem:[#allocation1 + $0x30] sm:$0xff pattern:$0x75316420]
    %v144 = vld.sshfl [vmem:[#allocation1 + $0x38] sm:$0xff pattern:$0x75316420]
    %145 = vst [vmem:[%s130] ss:$2 sm:$0xff] %v34
    %146 = vst [vmem:[%s132] ss:$2 sm:$0xff] %v35
    %v147 = vld.sshfl [vmem:[#allocation1] sm:$0xff pattern:$0x75316420]
    %v148 = vld.sshfl [vmem:[#allocation1 + $0x8] sm:$0xff pattern:$0x75316420]
    %v149 = vld.sshfl [vmem:[#allocation1 + $0x10] sm:$0xff pattern:$0x75316420]
    %160 = vst [vmem:[#allocation1] ss:$2 sm:$0xff] %v31
    %s161 = scalar_lea.vmem [#allocation1], 16
    %162 = vst [vmem:[%s161] ss:$2 sm:$0xff] %v32
    %s163 = scalar_lea.vmem [#allocation1], 32
    %164 = vst [vmem:[%s163] ss:$2 sm:$0xff] %v33
    %s165 = scalar_lea.vmem [#allocation1], 48
    %166 = vst [vmem:[%s165] ss:$2 sm:$0xff] %v34
    %v167 = vld.sshfl [vmem:[#allocation1] sm:$0xff pattern:$0x75316420]
    %v168 = vld.sshfl [vmem:[#allocation1 + $0x8] sm:$0xff pattern:$0x75316420]
    %v169 = vld.sshfl [vmem:[#allocation1 + $0x10] sm:$0xff pattern:$0x75316420]
    %v170 = vld.sshfl [vmem:[#allocation1 + $0x18] sm:$0xff pattern:$0x75316420]
    %v171 = vld.sshfl [vmem:[#allocation1 + $0x20] sm:$0xff pattern:$0x75316420]
    %v172 = vld.sshfl [vmem:[#allocation1 + $0x28] sm:$0xff pattern:$0x75316420]
    %v173 = vld.sshfl [vmem:[#allocation1 + $0x30] sm:$0xff pattern:$0x75316420]
    %v174 = vld.sshfl [vmem:[#allocation1 + $0x38] sm:$0xff pattern:$0x75316420]
    %175 = vst [vmem:[#allocation1] ss:$2 sm:$0xff] %v35
    %v176 = vld.sshfl [vmem:[#allocation1] sm:$0xff pattern:$0x75316420]
    %v177 = vld.sshfl [vmem:[#allocation1 + $0x8] sm:$0xff pattern:$0x75316420]
    %s189 = scalar_lea.vmem [#allocation1], 1
    %190 = vst [vmem:[%s189] ss:$2 sm:$0xff] %v31
    %s191 = scalar_lea.vmem [#allocation1], 17
    %192 = vst [vmem:[%s191] ss:$2 sm:$0xff] %v32
    %s193 = scalar_lea.vmem [#allocation1], 33
    %194 = vst [vmem:[%s193] ss:$2 sm:$0xff] %v33
    %s195 = scalar_lea.vmem [#allocation1], 49
    %196 = vst [vmem:[%s195] ss:$2 sm:$0xff] %v34
    %v197 = vld.sshfl [vmem:[#allocation1 + $0x8] sm:$0xff pattern:$0x75316420]
    %v198 = vld.sshfl [vmem:[#allocation1 + $0x10] sm:$0xff pattern:$0x75316420]
    %v199 = vld.sshfl [vmem:[#allocation1 + $0x18] sm:$0xff pattern:$0x75316420]
    %v200 = vld.sshfl [vmem:[#allocation1 + $0x20] sm:$0xff pattern:$0x75316420]
    %v201 = vld.sshfl [vmem:[#allocation1 + $0x28] sm:$0xff pattern:$0x75316420]
    %v202 = vld.sshfl [vmem:[#allocation1 + $0x30] sm:$0xff pattern:$0x75316420]
    %v203 = vld.sshfl [vmem:[#allocation1 + $0x38] sm:$0xff pattern:$0x75316420]
    %204 = vst [vmem:[%s189] ss:$2 sm:$0xff] %v35
    %205 = vst [vmem:[%s191] ss:$2 sm:$0xff] %v36
    %v206 = vld.sshfl [vmem:[#allocation1] sm:$0xff pattern:$0x75316420]
    %v207 = vld.sshfl [vmem:[#allocation1 + $0x8] sm:$0xff pattern:$0x75316420]
    %v208 = vld.sshfl [vmem:[#allocation1 + $0x10] sm:$0xff pattern:$0x75316420]
    %219 = vst [vmem:[#allocation1] ss:$2 sm:$0xff] %v32
    %s220 = scalar_lea.vmem [#allocation1], 16
    %221 = vst [vmem:[%s220] ss:$2 sm:$0xff] %v33
    %s222 = scalar_lea.vmem [#allocation1], 32
    %223 = vst [vmem:[%s222] ss:$2 sm:$0xff] %v34
    %s224 = scalar_lea.vmem [#allocation1], 48
    %225 = vst [vmem:[%s224] ss:$2 sm:$0xff] %v35
    %v226 = vld.sshfl [vmem:[#allocation1] sm:$0xff pattern:$0x75316420]
    %v227 = vld.sshfl [vmem:[#allocation1 + $0x8] sm:$0xff pattern:$0x75316420]
    %v228 = vld.sshfl [vmem:[#allocation1 + $0x10] sm:$0xff pattern:$0x75316420]
    %v229 = vld.sshfl [vmem:[#allocation1 + $0x18] sm:$0xff pattern:$0x75316420]
    %v230 = vld.sshfl [vmem:[#allocation1 + $0x20] sm:$0xff pattern:$0x75316420]
    %v231 = vld.sshfl [vmem:[#allocation1 + $0x28] sm:$0xff pattern:$0x75316420]
    %v232 = vld.sshfl [vmem:[#allocation1 + $0x30] sm:$0xff pattern:$0x75316420]
    %v233 = vld.sshfl [vmem:[#allocation1 + $0x38] sm:$0xff pattern:$0x75316420]
    %234 = vst [vmem:[#allocation1] ss:$2 sm:$0xff] %v36
    %v235 = vld.sshfl [vmem:[#allocation1] sm:$0xff pattern:$0x75316420]
    %v236 = vld.sshfl [vmem:[#allocation1 + $0x8] sm:$0xff pattern:$0x75316420]
    %vm237 = vcmask 1043456
    %v238 = vsel %vm237, %v49, %v79
    %v239 = vsel %vm237, %v50, %v80
    %v240 = vsel %vm237, %v51, %v81
    %v241 = vsel %vm237, %v52, %v82
    %v242 = vsel %vm237, %v53, %v83
    %v243 = vsel %vm237, %v54, %v84
    %v244 = vsel %vm237, %v55, %v85
    %v245 = vsel %vm237, %v56, %v88
    %v246 = vsel %vm237, %v58, %v89
    %v247 = vsel %vm237, %v59, %v90
    %v248 = vsel %vm237, %v108, %v138
    %v249 = vsel %vm237, %v109, %v139
    %v250 = vsel %vm237, %v110, %v140
    %v251 = vsel %vm237, %v111, %v141
    %v252 = vsel %vm237, %v112, %v142
    %v253 = vsel %vm237, %v113, %v143
    %v254 = vsel %vm237, %v114, %v144
    %v255 = vsel %vm237, %v115, %v147
    %v256 = vsel %vm237, %v117, %v148
    %v257 = vsel %vm237, %v118, %v149
    %v258 = vsel %vm237, %v167, %v197
    %v259 = vsel %vm237, %v168, %v198
    %v260 = vsel %vm237, %v169, %v199
    %v261 = vsel %vm237, %v170, %v200
    %v262 = vsel %vm237, %v171, %v201
    %v263 = vsel %vm237, %v172, %v202
    %v264 = vsel %vm237, %v173, %v203
    %v265 = vsel %vm237, %v174, %v206
    %v266 = vsel %vm237, %v176, %v207
    %v267 = vsel %vm237, %v177, %v208
    %v268 = vld [vmem:[%s1] sm:$0xff]
    %v269 = vld [vmem:[%s2] sm:$0xff]
    %271 = vset.pattern.permute.xlu0 0
    %272 = vperm.xlu0 %271, %v269
    %v273 = vpop.permute.xlu0 %272
    %vm275 = vcmask 228352
    %v277 = vsel %vm275, %v268, 0
    %v279 = vsel %vm237, %v226, 0
    %v281 = vsel %vm237, %v227, 0
    %v283 = vsel %vm237, %v228, 0
    %v285 = vsel %vm237, %v229, 0
    %v287 = vsel %vm237, %v230, 0
    %v289 = vsel %vm237, %v231, 0
    %v291 = vsel %vm237, %v232, 0
    %v293 = vsel %vm237, %v233, 0
    %v295 = vsel %vm237, %v235, 0
    %v297 = vsel %vm237, %v236, 0
    %299 = vmatpush.msra.mxu0 0.0
    %300 = vmatpush.msra.mxu0 0.0
    %301 = vmatpush.msra.mxu0 0.0
    %302 = vmatpush.msra.mxu0 0.0
    %303 = vmatpush.msra.mxu0 0.0
    %304 = vmatpush.msra.mxu0 0.0
    %305 = vmatpush.msra.mxu0 0.0
    %306 = vmatpush.msra.mxu0 0.0
    %307 = vmatpush.msra.mxu0 0.0
    %308 = vmatpush.msra.mxu0 0.0
    %309 = vmatpush.msra.mxu0 0.0
    %310 = vmatpush.msra.mxu0 0.0
    %311 = vmatpush.msra.mxu0 %v279
    %312 = vmatpush.msra.mxu0 %v258
    %313 = vmatpush.msra.mxu0 %v248
    %314 = vmatpush.msra.mxu0 %v238
    %315 = vmatmul.f32.gmra.mxu0 %v277
    %v316 = vpop.f32.mrf.mxu0
    %v317 = vadd.f32 %v273, %v316
    %318 = vdwg.mxu0
    %319 = vmatpush.msra.mxu0 0.0
    %320 = vmatpush.msra.mxu0 0.0
    %321 = vmatpush.msra.mxu0 0.0
    %322 = vmatpush.msra.mxu0 0.0
    %323 = vmatpush.msra.mxu0 0.0
    %324 = vmatpush.msra.mxu0 0.0
    %325 = vmatpush.msra.mxu0 0.0
    %326 = vmatpush.msra.mxu0 0.0
    %327 = vmatpush.msra.mxu0 0.0
    %328 = vmatpush.msra.mxu0 0.0
    %329 = vmatpush.msra.mxu0 0.0
    %330 = vmatpush.msra.mxu0 0.0
    %331 = vmatpush.msra.mxu0 %v281
    %332 = vmatpush.msra.mxu0 %v259
    %333 = vmatpush.msra.mxu0 %v249
    %334 = vmatpush.msra.mxu0 %v239
    %335 = vmatmul.f32.gmra.mxu0 %v277
    %v336 = vpop.f32.mrf.mxu0
    %v337 = vadd.f32 %v273, %v336
    %338 = vdwg.mxu0
    %339 = vmatpush.msra.mxu0 0.0
    %340 = vmatpush.msra.mxu0 0.0
    %341 = vmatpush.msra.mxu0 0.0
    %342 = vmatpush.msra.mxu0 0.0
    %343 = vmatpush.msra.mxu0 0.0
    %344 = vmatpush.msra.mxu0 0.0
    %345 = vmatpush.msra.mxu0 0.0
    %346 = vmatpush.msra.mxu0 0.0
    %347 = vmatpush.msra.mxu0 0.0
    %348 = vmatpush.msra.mxu0 0.0
    %349 = vmatpush.msra.mxu0 0.0
    %350 = vmatpush.msra.mxu0 0.0
    %351 = vmatpush.msra.mxu0 %v283
    %352 = vmatpush.msra.mxu0 %v260
    %353 = vmatpush.msra.mxu0 %v250
    %354 = vmatpush.msra.mxu0 %v240
    %355 = vmatmul.f32.gmra.mxu0 %v277
    %v356 = vpop.f32.mrf.mxu0
    %v357 = vadd.f32 %v273, %v356
    %358 = vdwg.mxu0
    %359 = vmatpush.msra.mxu0 0.0
    %360 = vmatpush.msra.mxu0 0.0
    %361 = vmatpush.msra.mxu0 0.0
    %362 = vmatpush.msra.mxu0 0.0
    %363 = vmatpush.msra.mxu0 0.0
    %364 = vmatpush.msra.mxu0 0.0
    %365 = vmatpush.msra.mxu0 0.0
    %366 = vmatpush.msra.mxu0 0.0
    %367 = vmatpush.msra.mxu0 0.0
    %368 = vmatpush.msra.mxu0 0.0
    %369 = vmatpush.msra.mxu0 0.0
    %370 = vmatpush.msra.mxu0 0.0
    %371 = vmatpush.msra.mxu0 %v285
    %372 = vmatpush.msra.mxu0 %v261
    %373 = vmatpush.msra.mxu0 %v251
    %374 = vmatpush.msra.mxu0 %v241
    %375 = vmatmul.f32.gmra.mxu0 %v277
    %v376 = vpop.f32.mrf.mxu0
    %v377 = vadd.f32 %v273, %v376
    %378 = vdwg.mxu0
    %379 = vmatpush.msra.mxu0 0.0
    %380 = vmatpush.msra.mxu0 0.0
    %381 = vmatpush.msra.mxu0 0.0
    %382 = vmatpush.msra.mxu0 0.0
    %383 = vmatpush.msra.mxu0 0.0
    %384 = vmatpush.msra.mxu0 0.0
    %385 = vmatpush.msra.mxu0 0.0
    %386 = vmatpush.msra.mxu0 0.0
    %387 = vmatpush.msra.mxu0 0.0
    %388 = vmatpush.msra.mxu0 0.0
    %389 = vmatpush.msra.mxu0 0.0
    %390 = vmatpush.msra.mxu0 0.0
    %391 = vmatpush.msra.mxu0 %v287
    %392 = vmatpush.msra.mxu0 %v262
    %393 = vmatpush.msra.mxu0 %v252
    %394 = vmatpush.msra.mxu0 %v242
    %395 = vmatmul.f32.gmra.mxu0 %v277
    %v396 = vpop.f32.mrf.mxu0
    %v397 = vadd.f32 %v273, %v396
    %398 = vdwg.mxu0
    %399 = vmatpush.msra.mxu0 0.0
    %400 = vmatpush.msra.mxu0 0.0
    %401 = vmatpush.msra.mxu0 0.0
    %402 = vmatpush.msra.mxu0 0.0
    %403 = vmatpush.msra.mxu0 0.0
    %404 = vmatpush.msra.mxu0 0.0
    %405 = vmatpush.msra.mxu0 0.0
    %406 = vmatpush.msra.mxu0 0.0
    %407 = vmatpush.msra.mxu0 0.0
    %408 = vmatpush.msra.mxu0 0.0
    %409 = vmatpush.msra.mxu0 0.0
    %410 = vmatpush.msra.mxu0 0.0
    %411 = vmatpush.msra.mxu0 %v289
    %412 = vmatpush.msra.mxu0 %v263
    %413 = vmatpush.msra.mxu0 %v253
    %414 = vmatpush.msra.mxu0 %v243
    %415 = vmatmul.f32.gmra.mxu0 %v277
    %v416 = vpop.f32.mrf.mxu0
    %v417 = vadd.f32 %v273, %v416
    %418 = vdwg.mxu0
    %419 = vmatpush.msra.mxu0 0.0
    %420 = vmatpush.msra.mxu0 0.0
    %421 = vmatpush.msra.mxu0 0.0
    %422 = vmatpush.msra.mxu0 0.0
    %423 = vmatpush.msra.mxu0 0.0
    %424 = vmatpush.msra.mxu0 0.0
    %425 = vmatpush.msra.mxu0 0.0
    %426 = vmatpush.msra.mxu0 0.0
    %427 = vmatpush.msra.mxu0 0.0
    %428 = vmatpush.msra.mxu0 0.0
    %429 = vmatpush.msra.mxu0 0.0
    %430 = vmatpush.msra.mxu0 0.0
    %431 = vmatpush.msra.mxu0 %v291
    %432 = vmatpush.msra.mxu0 %v264
    %433 = vmatpush.msra.mxu0 %v254
    %434 = vmatpush.msra.mxu0 %v244
    %435 = vmatmul.f32.gmra.mxu0 %v277
    %v436 = vpop.f32.mrf.mxu0
    %v437 = vadd.f32 %v273, %v436
    %438 = vdwg.mxu0
    %439 = vmatpush.msra.mxu0 0.0
    %440 = vmatpush.msra.mxu0 0.0
    %441 = vmatpush.msra.mxu0 0.0
    %442 = vmatpush.msra.mxu0 0.0
    %443 = vmatpush.msra.mxu0 0.0
    %444 = vmatpush.msra.mxu0 0.0
    %445 = vmatpush.msra.mxu0 0.0
    %446 = vmatpush.msra.mxu0 0.0
    %447 = vmatpush.msra.mxu0 0.0
    %448 = vmatpush.msra.mxu0 0.0
    %449 = vmatpush.msra.mxu0 0.0
    %450 = vmatpush.msra.mxu0 0.0
    %451 = vmatpush.msra.mxu0 %v293
    %452 = vmatpush.msra.mxu0 %v265
    %453 = vmatpush.msra.mxu0 %v255
    %454 = vmatpush.msra.mxu0 %v245
    %455 = vmatmul.f32.gmra.mxu0 %v277
    %v456 = vpop.f32.mrf.mxu0
    %v457 = vadd.f32 %v273, %v456
    %458 = vdwg.mxu0
    %459 = vmatpush.msra.mxu0 0.0
    %460 = vmatpush.msra.mxu0 0.0
    %461 = vmatpush.msra.mxu0 0.0
    %462 = vmatpush.msra.mxu0 0.0
    %463 = vmatpush.msra.mxu0 0.0
    %464 = vmatpush.msra.mxu0 0.0
    %465 = vmatpush.msra.mxu0 0.0
    %466 = vmatpush.msra.mxu0 0.0
    %467 = vmatpush.msra.mxu0 0.0
    %468 = vmatpush.msra.mxu0 0.0
    %469 = vmatpush.msra.mxu0 0.0
    %470 = vmatpush.msra.mxu0 0.0
    %471 = vmatpush.msra.mxu0 %v295
    %472 = vmatpush.msra.mxu0 %v266
    %473 = vmatpush.msra.mxu0 %v256
    %474 = vmatpush.msra.mxu0 %v246
    %475 = vmatmul.f32.gmra.mxu0 %v277
    %v476 = vpop.f32.mrf.mxu0
    %v477 = vadd.f32 %v273, %v476
    %478 = vdwg.mxu0
    %479 = vmatpush.msra.mxu0 0.0
    %480 = vmatpush.msra.mxu0 0.0
    %481 = vmatpush.msra.mxu0 0.0
    %482 = vmatpush.msra.mxu0 0.0
    %483 = vmatpush.msra.mxu0 0.0
    %484 = vmatpush.msra.mxu0 0.0
    %485 = vmatpush.msra.mxu0 0.0
    %486 = vmatpush.msra.mxu0 0.0
    %487 = vmatpush.msra.mxu0 0.0
    %488 = vmatpush.msra.mxu0 0.0
    %489 = vmatpush.msra.mxu0 0.0
    %490 = vmatpush.msra.mxu0 0.0
    %491 = vmatpush.msra.mxu0 %v297
    %492 = vmatpush.msra.mxu0 %v267
    %493 = vmatpush.msra.mxu0 %v257
    %494 = vmatpush.msra.mxu0 %v247
    %495 = vmatmul.f32.gmra.mxu0 %v277
    %v496 = vpop.f32.mrf.mxu0
    %v497 = vadd.f32 %v273, %v496
    %498 = vdwg.mxu0
    %499 = vst [vmem:[#allocation5] sm:$0xff] %v317
    %500 = vst [vmem:[#allocation5 + $0x8] sm:$0xff] %v337
    %501 = vst [vmem:[#allocation5 + $0x10] sm:$0xff] %v357
    %502 = vst [vmem:[#allocation5 + $0x18] sm:$0xff] %v377
    %503 = vst [vmem:[#allocation5 + $0x20] sm:$0xff] %v397
    %504 = vst [vmem:[#allocation5 + $0x28] sm:$0xff] %v417
    %505 = vst [vmem:[#allocation5 + $0x30] sm:$0xff] %v437
    %506 = vst [vmem:[#allocation5 + $0x38] sm:$0xff] %v457
    %507 = vst [vmem:[#allocation5 + $0x40] sm:$0xff] %v477
    %508 = vst [vmem:[#allocation5 + $0x48] sm:$0xff] %v497
    // Predicated region
    $region18: #{tpu_custom_call.1} parent=1 // pred_check
      _
    $region19: #{tpu_custom_call.1} parent=1 // pred_check_branch
      %510 = sbr.rel (0) target = $region21
    $region20: #{tpu_custom_call.1} parent=1 // pred_region
      %512 = vsyncadd [#allocation4], 0
      %s514 = sshll.u32 [#allocation5], 4
      %s515 = int_to_ptr.vmem [resolvable:$true] %s514
      %s516 = sshll.u32 %s3, 4
      %s517 = int_to_ptr.hbm [resolvable:$true] %s516
      %519 = dma.vmem_to_hbm [thread:$0]  %s515, 1280, %s517, [#allocation4]
    $region21: #{tpu_custom_call.1} parent=1 // pred_fallthru
      _
    // Predicated region
    $region22: #{tpu_custom_call.1} parent=1 // pred_check
      _
    $region23: #{tpu_custom_call.1} parent=1 // pred_check_branch
      %521 = sbr.rel (0) target = $region25
    $region24: #{tpu_custom_call.1} parent=1 // pred_region
      %523 = dma.done [#allocation4], 1280
    $region25: #{tpu_custom_call.1} parent=1 // pred_fallthru
      _
    %524 = vsyncpa [#allocation3], 1
    %525 = vsyncpa [#allocation4], 1

</llo_original>
